<compile_context>
chip_gen: v7x
topology: tpu7x:2x2x1
jax: 0.10.0
libtpu: 0.0.40
codegen_flags: <defaults>
</compile_context>

<pallas_src>
import functools
import math

import jax
import jax.numpy as jnp
from jax.experimental import pallas as pl
from jax.experimental.pallas import tpu as pltpu


def build_positional_encoding(max_len: int, dim: int) -> jnp.ndarray:
    """Deterministic PE table, same math as PositionalEncoding.__init__ ([max_len, dim], f32)."""
    position = jnp.arange(max_len, dtype=jnp.float32)[:, None]          # [max_len, 1]
    dim_even = int((dim + 1) // 2) * 2
    if dim_even == dim:
        div_term = jnp.exp(
            jnp.arange(0, dim, 2, dtype=jnp.float32) * -(math.log(10000.0) / dim))
        sin_part = jnp.sin(position * div_term)
        cos_part = jnp.cos(position * div_term)
    else:
        div_term = jnp.exp(
            jnp.arange(0, dim_even, 2, dtype=jnp.float32) * -(math.log(10000.0) / dim_even))
        sin_part = jnp.sin(position * div_term)
        cos_part = jnp.cos(position * div_term[:-1])
    pe = jnp.zeros((max_len, dim), jnp.float32)
    pe = pe.at[:, 0::2].set(sin_part)
    pe = pe.at[:, 1::2].set(cos_part)
    return pe


def _pe_add_kernel(emb_ref, pe_ref, out_ref, *, scale):
    # emb_ref/out_ref: (tl, B, D) or (tl, D);  pe_ref: (tl, D) or (1, D).
    emb = emb_ref[...].astype(jnp.float32)
    pe = pe_ref[...].astype(jnp.float32)
    if len(out_ref.shape) == 3:
        pe = pe[:, None, :]          # broadcast PE over the batch (sublane) axis
    out_ref[...] = (emb * scale + pe).astype(out_ref.dtype)


def _sublane_multiple(dtype) -> int:
    return max(8, 32 // jnp.dtype(dtype).itemsize)


def _xla_positional_encoding(emb, pe_table, scale, step):
    """Plain-XLA path: tiny inputs / non-lane-dense D where pallas overhead dominates."""
    L = emb.shape[0]
    if step is None:
        pe = pe_table[:L].astype(jnp.float32)[:, None, :]
    else:
        pe = jax.lax.dynamic_slice_in_dim(pe_table, step, 1, axis=0)
        pe = pe.astype(jnp.float32)[:, None, :]
    return (emb.astype(jnp.float32) * scale + pe).astype(emb.dtype)


def positional_encoding_forward(emb, pe_table, dim, step=None, *,
                                target_block_bytes=4 * 1024 * 1024,
                                min_pallas_bytes=256 * 1024):
    """emb: [L, B, D].  Returns emb*sqrt(dim) + pe (broadcast over batch)."""
    L, B, D = emb.shape
    scale = float(math.sqrt(dim))
    emb_itemsize = jnp.dtype(emb.dtype).itemsize
    pe_itemsize = jnp.dtype(pe_table.dtype).itemsize
    total_bytes = L * B * D * emb_itemsize

    # Bypass: pallas_call launch + grid-step overhead dominates sub-256 KiB elementwise
    # work (typical decode step), and D % 128 != 0 would force masked partial stores.
    if total_bytes < min_pallas_bytes or (D % 128) != 0:
        return _xla_positional_encoding(emb, pe_table, scale, step)

    # B is the sublane dim of every (tl, B, D) tile; for B == 1 flatten to a dense
    # 2D (L, D) problem (metadata-only reshape) so no sublanes are wasted.
    squeeze_batch = (B == 1)
    emb2 = emb.reshape(L, D) if squeeze_batch else emb
    rows_b = 1 if squeeze_batch else B

    # Tile over L: ~4 MiB lane-dense blocks amortize the ~0.35 us per-step overhead;
    # cap tl at ceil(L/2) so the grid keeps >= 2 steps (megacore / v7x 2-TC split);
    # round tl to the sublane multiple so the 2D PE block obeys the (8/16, 128) rule.
    sub = max(_sublane_multiple(emb.dtype), _sublane_multiple(pe_table.dtype))
    row_bytes = rows_b * D * emb_itemsize
    tl = max(1, target_block_bytes // row_bytes)
    if L > sub:
        tl = min(tl, pl.cdiv(L, 2))
    tl = min(tl, L)
    tl = max(sub, (tl // sub) * sub)
    grid = (pl.cdiv(L, tl),)

    emb_block_bytes = tl * rows_b * D * emb_itemsize
    pe_block_rows = tl if step is None else 1
    pe_block_bytes = pe_block_rows * D * pe_itemsize
    vmem_needed = 2 * (2 * emb_block_bytes + pe_block_bytes)   # double-buffered in/out/PE
    if vmem_needed > 48 * 1024 * 1024:
        # Even the minimum tile would not double-buffer inside v7x's 64 MiB/TC.
        return _xla_positional_encoding(emb, pe_table, scale, step)

    if squeeze_batch:
        emb_spec = pl.BlockSpec((tl, D), lambda i: (i, 0))
    else:
        emb_spec = pl.BlockSpec((tl, B, D), lambda i: (i, 0, 0))

    if step is None:
        # Stream PE blocks straight out of the (max_len, D) table in HBM:
        # no wrapper-side slice/reshape slab, no size-1 sublane dim.
        pe_in = pe_table
        pe_spec = pl.BlockSpec((tl, D), lambda i: (i, 0))
    else:
        # Single [1, D] row; broadcast over L (and batch) inside the kernel.
        pe_in = jax.lax.dynamic_slice_in_dim(pe_table, step, 1, axis=0)
        pe_spec = pl.BlockSpec((1, D), lambda i: (0, 0))

    # VMEM limit derived from the real tile footprint plus headroom; never below the
    # 16 MiB v5e scoped default, never above a v7x-safe 56 MiB.
    vmem_limit = int(min(max(vmem_needed + 4 * 1024 * 1024, 16 * 1024 * 1024),
                         56 * 1024 * 1024))

    kernel = functools.partial(_pe_add_kernel, scale=scale)
    out = pl.pallas_call(
        kernel,
        out_shape=jax.ShapeDtypeStruct(emb2.shape, emb.dtype),
        grid=grid,
        in_specs=[emb_spec, pe_spec],
        out_specs=emb_spec,
        compiler_params=pltpu.CompilerParams(
            dimension_semantics=("parallel",),   # split the L-grid across TCs
            vmem_limit_bytes=vmem_limit,
        ),
    )(emb2, pe_in)
    return out.reshape(L, B, D) if squeeze_batch else out


class EmbeddingsEncoderPallas:
    """JAX/Pallas port of Embeddings_encoder (forward semantics only)."""

    def __init__(self, word_vec_size, word_vocab_size, word_padding_idx,
                 position_encoding=False, dropout=0.0, max_len=5000,
                 key=jax.random.PRNGKey(0)):
        self.word_vec_size = word_vec_size
        self.word_padding_idx = word_padding_idx
        self.position_encoding = position_encoding
        # Word-embedding table; the PyTorch forward never applies it, we mirror that.
        emb_table = jax.random.normal(key, (word_vocab_size, word_vec_size),
                                      dtype=jnp.float32)
        self.word_lut = emb_table.at[word_padding_idx].set(0.0)
        if position_encoding:
            self.pe = build_positional_encoding(max_len, word_vec_size)   # f32 [max_len, dim]
            # Per-dtype cached casts so bf16 callers stream a bf16 PE (half the bytes),
            # without re-casting the whole table every call.
            self._pe_by_dtype = {jnp.dtype(jnp.float32): self.pe}
        # TODO(synk): stochastic dropout (p>0) not implemented; module default p=0 -> identity.

    def _pe_for(self, dtype):
        dt = jnp.dtype(dtype)
        pe = self._pe_by_dtype.get(dt)
        if pe is None:
            pe = self.pe.astype(dt)
            self._pe_by_dtype[dt] = pe
        return pe

    def forward(self, source, step=None):
        if self.position_encoding:
            return positional_encoding_forward(source, self._pe_for(source.dtype),
                                               self.word_vec_size, step=step)
        return source


if __name__ == "__main__":
    # Lane/sublane-friendly shapes: D=128 (dense stores), B=8, L big enough
    # (512 KiB) that the Pallas path (not the tiny-input bypass) is exercised.
    L, B, D = 128, 8, 128
    vocab = 100
    key = jax.random.PRNGKey(0)
    k_emb, k_src, k_src1 = jax.random.split(key, 3)

    module = EmbeddingsEncoderPallas(
        word_vec_size=D, word_vocab_size=vocab, word_padding_idx=0,
        position_encoding=True, dropout=0.0, key=k_emb,
    )

    source = jax.random.normal(k_src, (L, B, D), dtype=jnp.float32)
    scale = math.sqrt(D)

    # --- step=None (encoder) path: tiled Pallas kernel, 2 grid steps ---
    out = jax.block_until_ready(module.forward(source))
    ref = source * scale + module.pe[:L][:, None, :]
    assert out.shape == (L, B, D)
    assert jnp.allclose(out, ref, atol=1e-5, rtol=1e-5)

    # --- step path (decode step): (1, D) PE row broadcast in-kernel ---
    step = 3
    out_step = jax.block_until_ready(module.forward(source, step=step))
    ref_step = source * scale + module.pe[step][None, None, :]
    assert jnp.allclose(out_step, ref_step, atol=1e-5, rtol=1e-5)

    # --- batch==1 path: flattened to a dense 2D (L, D) Pallas problem ---
    src_b1 = jax.random.normal(k_src1, (1024, 1, D), dtype=jnp.float32)
    out_b1 = jax.block_until_ready(module.forward(src_b1))
    ref_b1 = src_b1 * scale + module.pe[:1024][:, None, :]
    assert out_b1.shape == (1024, 1, D)
    assert jnp.allclose(out_b1, ref_b1, atol=1e-5, rtol=1e-5)

    # --- tiny decode-sized input: plain-XLA bypass ---
    src_small = source[:4, :2, :]
    out_small = jax.block_until_ready(module.forward(src_small, step=7))
    ref_small = src_small * scale + module.pe[7][None, None, :]
    assert jnp.allclose(out_small, ref_small, atol=1e-5, rtol=1e-5)

    # --- position_encoding=False: identity passthrough ---
    ident = EmbeddingsEncoderPallas(D, vocab, 0, position_encoding=False, key=k_emb)
    assert jnp.array_equal(ident.forward(source), source)

    print("KERNEL_OK")
</pallas_src>

<mosaic_0001>
module attributes {stable_mosaic.version = 11 : i64} {
  func.func @_pe_add_kernel(%arg0: i32, %arg1: memref<64x8x128xf32, #tpu.memory_space<vmem>>, %arg2: memref<64x128xf32, #tpu.memory_space<vmem>>, %arg3: memref<64x8x128xf32, #tpu.memory_space<vmem>>) attributes {dimension_semantics = [#tpu.dimension_semantics<parallel>], iteration_bounds = array<i64: 2>, scalar_prefetch = 0 : i64, scratch_operands = 0 : i64, tpu.core_type = #tpu.core_type<tc>, window_params = [{transform_indices = @transform_0, window_bounds = array<i64: 64, 8, 128>}, {transform_indices = @transform_1, window_bounds = array<i64: 64, 128>}, {transform_indices = @transform_2, window_bounds = array<i64: 64, 8, 128>}]} {
    %c0 = arith.constant 0 : index
    %c0_0 = arith.constant 0 : index
    %c0_1 = arith.constant 0 : index
    %0 = vector.load %arg1[%c0, %c0_0, %c0_1] : memref<64x8x128xf32, #tpu.memory_space<vmem>>, vector<64x8x128xf32>
    %c0_2 = arith.constant 0 : index
    %c0_3 = arith.constant 0 : index
    %1 = vector.load %arg2[%c0_2, %c0_3] : memref<64x128xf32, #tpu.memory_space<vmem>>, vector<64x128xf32>
    %2 = vector.shape_cast %1 : vector<64x128xf32> to vector<64x1x128xf32>
    %cst = arith.constant 11.3137083 : f32
    %3 = vector.broadcast %cst : f32 to vector<64x8x128xf32>
    %4 = arith.mulf %0, %3 : vector<64x8x128xf32>
    %5 = vector.broadcast %2 : vector<64x1x128xf32> to vector<64x8x128xf32>
    %6 = arith.addf %4, %5 : vector<64x8x128xf32>
    %c0_4 = arith.constant 0 : index
    %c0_5 = arith.constant 0 : index
    %c0_6 = arith.constant 0 : index
    %7 = vector.load %arg3[%c0_4, %c0_5, %c0_6] : memref<64x8x128xf32, #tpu.memory_space<vmem>>, vector<64x8x128xf32>
    tpu.vector_store %arg3[%c0_4, %c0_5, %c0_6], %6 {strides = array<i32>} : memref<64x8x128xf32, #tpu.memory_space<vmem>>, vector<64x8x128xf32>,
    return
  }
  func.func @transform_0(%arg0: i32) -> (i32, i32, i32) {
    %c0_i32 = arith.constant 0 : i32
    %c0_i32_0 = arith.constant 0 : i32
    %c0_i32_1 = arith.constant 0 : i32
    return %arg0, %c0_i32, %c0_i32_0 : i32, i32, i32
  }
  func.func @transform_1(%arg0: i32) -> (i32, i32) {
    %c0_i32 = arith.constant 0 : i32
    %c0_i32_0 = arith.constant 0 : i32
    return %arg0, %c0_i32 : i32, i32
  }
  func.func @transform_2(%arg0: i32) -> (i32, i32, i32) {
    %c0_i32 = arith.constant 0 : i32
    %c0_i32_0 = arith.constant 0 : i32
    %c0_i32_1 = arith.constant 0 : i32
    return %arg0, %c0_i32, %c0_i32_0 : i32, i32, i32
  }
}

</mosaic_0001>

<llo_original>
// kernel: tpu_custom_call.1
$region0: #{tpu_custom_call.1}
  #allocation0 [shape = 'u32[]', space=smem, size = 0x4, offset = 0x4, fixed_abs, tag = 'smem constant byte address 0x4 - core index']
  #allocation1 [shape = 'u32[144,128]{1,0:T(1,128)}', space=vmem, size = 0x12000, scoped, tag = 'internal scratch']
  %s0 = inlined_call_operand.hbm [shape: f32[128,8,128], index: 0, kind: input, shape index: {}]
  %s1 = inlined_call_operand.hbm [shape: f32[5000,128], index: 1, kind: input, shape index: {}]
  %s2 = inlined_call_operand.hbm [shape: f32[128,8,128], index: 2, kind: output, shape index: {}]
  %s3 = sld [smem:[#allocation0]]
  $region49: #{tpu_custom_call.1} parent=0
    _
  %s5 = ssub.s32 1, %s3
  %s6 = scalar_select 0, %s5, %s3
  $region1: #{tpu_custom_call.1} parent=0
    #allocation2 [shape = 'u8[524288]{0}', space=vmem, size = 0x80000, scoped, tag = 'input window, operand 0']
    #allocation3 [shape = 's32[2]{0}', space=sflag, size = 0x8, scoped, tag = 'scoped memory for tpu_custom_call.1']
    #allocation4 [shape = 's32[2]{0}', space=sflag, size = 0x8, scoped, tag = 'scoped memory for tpu_custom_call.1']
    #allocation5 [shape = 'u8[65536]{0}', space=vmem, size = 0x10000, scoped, tag = 'input window, operand 1']
    #allocation6 [shape = 's32[2]{0}', space=sflag, size = 0x8, scoped, tag = 'scoped memory for tpu_custom_call.1']
    #allocation7 [shape = 'u8[524288]{0}', space=vmem, size = 0x80000, scoped, tag = 'output window, operand 0']
    %7 = vsyncpa [#allocation3], 0
    %s8 = scalar_lea.sflag [#allocation3], 1
    %9 = vsyncpa %s8, 0
    %10 = vsyncpa [#allocation6], 0
    %s11 = scalar_lea.sflag [#allocation6], 1
    %12 = vsyncpa %s11, 0
    %13 = vsyncpa [#allocation4], 0
    %s14 = scalar_lea.sflag [#allocation4], 1
    %15 = vsyncpa %s14, 0
    loop: start=0, step=1, limit=4
    $region2: #{tpu_custom_call.1} parent=1 // loop_pre_header
      _
    $region3: #{tpu_custom_call.1} parent=1 // loop_header
      %s17 = sphi 0, %s21
      %p18 = scmp.ge.s32.totalorder %s17, 4
      %s27 = sphi 0, %s29
      %s30 = sphi 0, %s27
      %s31 = sphi 0, %s30
      %s47 = sphi 0, %s31
      %s53 = sphi 0, %s55
      %s56 = sphi 0, %s53
      %s57 = sphi 0, %s56
      %s73 = sphi 0, %s57
      %s79 = sphi 0, %s81
      %s82 = sphi 0, %s79
      %s83 = sphi 0, %s82
      %s99 = sphi 0, %s83
    $region4: #{tpu_custom_call.1} parent=1 // loop_header_branch
      %20 = sbr.rel (%p18) target = $region8
    $region5: #{tpu_custom_call.1} parent=1 // loop_body
      %s22 = ssub.s32 %s17, 1
      %s23 = ssub.s32 %s17, 2
      %s24 = sadd.s32 %s17, 1
      %s25 = ssub.s32 %s17, %s24
      %p26 = scmp.eq.s32.totalorder %s25, 0
      %s28 = sadd.s32 %s27, 1
      %s29 = scalar_select %p26, %s27, %s28
      %p32 = pneg %p26
      %p33 = scmp.eq.s32.totalorder %s17, 1
      %p34 = por %p32, %p33
      %p35 = scmp.ne.s32.totalorder %s27, %s30
      %p36 = scmp.eq.s32.totalorder %s17, 0
      %p37 = por %p35, %p36
      %p38 = scmp.ne.s32.totalorder %s27, %s30
      %p39 = scmp.eq.s32.totalorder %s22, 1
      %p40 = por %p38, %p39
      %p41 = scmp.ne.s32.totalorder %s30, %s31
      %p42 = scmp.eq.s32.totalorder %s22, 0
      %p43 = por %p41, %p42
      %p44 = scmp.ne.s32.totalorder %s30, %s31
      %p45 = scmp.eq.s32.totalorder %s23, 1
      %p46 = por %p44, %p45
      %p48 = scmp.ne.s32.totalorder %s31, %s47
      %p49 = scmp.eq.s32.totalorder %s23, 0
      %p50 = por %p48, %p49
      %s51 = ssub.s32 %s17, %s24
      %p52 = scmp.eq.s32.totalorder %s51, 0
      %s54 = sadd.s32 %s53, 1
      %s55 = scalar_select %p52, %s53, %s54
      %p58 = pneg %p52
      %p59 = scmp.eq.s32.totalorder %s17, 1
      %p60 = por %p58, %p59
      %p61 = scmp.ne.s32.totalorder %s53, %s56
      %p62 = scmp.eq.s32.totalorder %s17, 0
      %p63 = por %p61, %p62
      %p64 = scmp.ne.s32.totalorder %s53, %s56
      %p65 = scmp.eq.s32.totalorder %s22, 1
      %p66 = por %p64, %p65
      %p67 = scmp.ne.s32.totalorder %s56, %s57
      %p68 = scmp.eq.s32.totalorder %s22, 0
      %p69 = por %p67, %p68
      %p70 = scmp.ne.s32.totalorder %s56, %s57
      %p71 = scmp.eq.s32.totalorder %s23, 1
      %p72 = por %p70, %p71
      %p74 = scmp.ne.s32.totalorder %s57, %s73
      %p75 = scmp.eq.s32.totalorder %s23, 0
      %p76 = por %p74, %p75
      %s77 = ssub.s32 %s17, %s24
      %p78 = scmp.eq.s32.totalorder %s77, 0
      %s80 = sadd.s32 %s79, 1
      %s81 = scalar_select %p78, %s79, %s80
      %p84 = pneg %p78
      %p85 = scmp.eq.s32.totalorder %s17, 1
      %p86 = por %p84, %p85
      %p87 = scmp.ne.s32.totalorder %s79, %s82
      %p88 = scmp.eq.s32.totalorder %s17, 0
      %p89 = por %p87, %p88
      %p90 = scmp.ne.s32.totalorder %s79, %s82
      %p91 = scmp.eq.s32.totalorder %s22, 1
      %p92 = por %p90, %p91
      %p93 = scmp.ne.s32.totalorder %s82, %s83
      %p94 = scmp.eq.s32.totalorder %s22, 0
      %p95 = por %p93, %p94
      %p96 = scmp.ne.s32.totalorder %s82, %s83
      %p97 = scmp.eq.s32.totalorder %s23, 1
      %p98 = por %p96, %p97
      %p100 = scmp.ne.s32.totalorder %s83, %s99
      %p101 = scmp.eq.s32.totalorder %s23, 0
      %p102 = por %p100, %p101
      %p103 = scmp.le.s32.totalorder 1, %s17
      %p104 = scmp.lt.s32.totalorder %s17, 3
      %p105 = pnand %p103, %p104
      %p106 = pneg %p105
      // Predicated region
      $region9: #{tpu_custom_call.1} parent=5 // pred_check
        _
      $region10: #{tpu_custom_call.1} parent=5 // pred_check_branch
        %108 = sbr.rel (%p105) target = $region12
      $region11: #{tpu_custom_call.1} parent=5 // pred_region
        %s109 = ssub.s32 %s17, 1
      $region12: #{tpu_custom_call.1} parent=5 // pred_fallthru
        _
      %p110 = scmp.lt.s32.totalorder %s17, 2
      // Predicated region
      $region13: #{tpu_custom_call.1} parent=5 // pred_check
        %p111 = pneg %p110
      $region14: #{tpu_custom_call.1} parent=5 // pred_check_branch
        %113 = sbr.rel (%p111) target = $region16
      $region15: #{tpu_custom_call.1} parent=5 // pred_region
        // Predicated region
        $region17: #{tpu_custom_call.1} parent=15 // pred_check
          %p114 = pneg %p37
        $region18: #{tpu_custom_call.1} parent=15 // pred_check_branch
          %116 = sbr.rel (%p114) target = $region20
        $region19: #{tpu_custom_call.1} parent=15 // pred_region
          %s117 = sand.u32 %s27, 1
          %s118 = scalar_lea.sflag [#allocation3], %s117
          %s119 = sand.u32 %s27, 1
          %s120 = smul.addr %s119, 512
          %s121 = scalar_lea.vmem [#allocation2], %s120
          %s122 = smul.u32 64, %s17
          %s124 = ssub.s32 8192, 8192
          %125 = vsyncadd %s118, %s124
          %s126 = smul.addr %s122, 128
          %s127 = scalar_lea.hbm %s0, %s126
          %s128 = sshll.u32 %s121, 4
          %s129 = int_to_ptr.vmem [resolvable:$true] %s128
          %134 = dma.hbm_to_vmem [thread:$0]  %s127, 8192, %s129, %s118, 128, 128, 8
        $region20: #{tpu_custom_call.1} parent=15 // pred_fallthru
          _
        // Predicated region
        $region21: #{tpu_custom_call.1} parent=15 // pred_check
          %p135 = pneg %p63
        $region22: #{tpu_custom_call.1} parent=15 // pred_check_branch
          %137 = sbr.rel (%p135) target = $region24
        $region23: #{tpu_custom_call.1} parent=15 // pred_region
          %s138 = sand.u32 %s53, 1
          %s139 = scalar_lea.sflag [#allocation6], %s138
          %s140 = sand.u32 %s53, 1
          %s141 = smul.addr %s140, 64
          %s142 = scalar_lea.vmem [#allocation5], %s141
          %s143 = smul.u32 8, %s17
          %s144 = ssub.s32 625, %s143
          %p145 = scmp.lt.s32.totalorder %s144, 8
          %s146 = scalar_select %p145, %s144, 8
          %s147 = smul.u32 128, %s146
          %s149 = ssub.s32 1024, %s147
          %150 = vsyncadd %s139, %s149
          %p151 = scmp.ne.s32.totalorder 0, %s147
          %s152 = smul.addr %s143, 128
          %s153 = scalar_lea.hbm %s1, %s152
          %s154 = smul.u32 8, %s146
          %s155 = sshll.u32 %s142, 4
          %s156 = int_to_ptr.vmem [resolvable:$true] %s155
          %s157 = sshll.u32 %s154, 4
          %161 = dma.hbm_to_vmem [thread:$0]  (%p151), %s153, %s157, %s156, %s139, 128, 128, 8
        $region24: #{tpu_custom_call.1} parent=15 // pred_fallthru
          _
      $region16: #{tpu_custom_call.1} parent=5 // pred_fallthru
        _
      %p162 = scmp.le.s32.totalorder 1, %s17
      %p163 = scmp.lt.s32.totalorder %s17, 3
      %p164 = pnand %p162, %p163
      %p165 = pneg %p164
      // Predicated region
      $region25: #{tpu_custom_call.1} parent=5 // pred_check
        _
      $region26: #{tpu_custom_call.1} parent=5 // pred_check_branch
        %167 = sbr.rel (%p164) target = $region28
      $region27: #{tpu_custom_call.1} parent=5 // pred_region
        %s168 = ssub.s32 %s17, 1
        %s169 = sand.u32 %s30, 1
        %s170 = scalar_lea.sflag [#allocation3], %s169
        %s171 = sand.u32 %s30, 1
        %s172 = smul.addr %s171, 512
        %s173 = scalar_lea.vmem [#allocation2], %s172
        // Predicated region
        $region29: #{tpu_custom_call.1} parent=27 // pred_check
          %p174 = pneg %p43
        $region30: #{tpu_custom_call.1} parent=27 // pred_check_branch
          %176 = sbr.rel (%p174) target = $region32
        $region31: #{tpu_custom_call.1} parent=27 // pred_region
          %177 = dma.done %s170, 8192
        $region32: #{tpu_custom_call.1} parent=27 // pred_fallthru
          _
        %s178 = sand.u32 %s56, 1
        %s179 = scalar_lea.sflag [#allocation6], %s178
        %s180 = sand.u32 %s56, 1
        %s181 = smul.addr %s180, 64
        %s182 = scalar_lea.vmem [#allocation5], %s181
        // Predicated region
        $region33: #{tpu_custom_call.1} parent=27 // pred_check
          %p183 = pneg %p69
        $region34: #{tpu_custom_call.1} parent=27 // pred_check_branch
          %185 = sbr.rel (%p183) target = $region36
        $region35: #{tpu_custom_call.1} parent=27 // pred_region
          %186 = dma.done %s179, 1024
        $region36: #{tpu_custom_call.1} parent=27 // pred_fallthru
          _
        %s187 = sand.u32 %s30, 1
        %s188 = scalar_lea.sflag [#allocation3], %s187
        %s189 = sand.u32 %s30, 1
        %s190 = smul.addr %s189, 512
        %s191 = scalar_lea.vmem [#allocation2], %s190
        %p192 = pneg %p43
        %p193 = pneg %p40
        %s194 = sand.u32 %s56, 1
        %s195 = scalar_lea.sflag [#allocation6], %s194
        %s196 = sand.u32 %s56, 1
        %s197 = smul.addr %s196, 64
        %s198 = scalar_lea.vmem [#allocation5], %s197
        %p199 = pneg %p69
        %p200 = pneg %p66
        %p201 = pneg %p95
        %p202 = pneg %p92
        %s203 = sand.u32 %s82, 1
        %s204 = scalar_lea.sflag [#allocation4], %s203
        %s205 = sand.u32 %s82, 1
        %s206 = smul.addr %s205, 512
        %s207 = scalar_lea.vmem [#allocation7], %s206
        %s208 = smul.u32 64, %s22
        %s209 = smul.u32 8, %s22
        %s210 = ssub.s32 625, %s209
        %p211 = scmp.lt.s32.totalorder %s210, 8
        %s212 = scalar_select %p211, %s210, 8
        %s213 = smul.u32 128, %s212
        %s214 = smul.u32 64, %s22
        %v215 = vld [vmem:[%s173] sm:$0xff]
        %v216 = vld [vmem:[%s173 + $0x8] sm:$0xff]
        %v217 = vld [vmem:[%s173 + $0x10] sm:$0xff]
        %v218 = vld [vmem:[%s173 + $0x18] sm:$0xff]
        %v219 = vld [vmem:[%s173 + $0x20] sm:$0xff]
        %v220 = vld [vmem:[%s173 + $0x28] sm:$0xff]
        %v221 = vld [vmem:[%s173 + $0x30] sm:$0xff]
        %v222 = vld [vmem:[%s173 + $0x38] sm:$0xff]
        %v223 = vld [vmem:[%s173 + $0x40] sm:$0xff]
        %v224 = vld [vmem:[%s173 + $0x48] sm:$0xff]
        %v225 = vld [vmem:[%s173 + $0x50] sm:$0xff]
        %v226 = vld [vmem:[%s173 + $0x58] sm:$0xff]
        %v227 = vld [vmem:[%s173 + $0x60] sm:$0xff]
        %v228 = vld [vmem:[%s173 + $0x68] sm:$0xff]
        %v229 = vld [vmem:[%s173 + $0x70] sm:$0xff]
        %v230 = vld [vmem:[%s173 + $0x78] sm:$0xff]
        %v231 = vld [vmem:[%s173 + $0x80] sm:$0xff]
        %v232 = vld [vmem:[%s173 + $0x88] sm:$0xff]
        %v233 = vld [vmem:[%s173 + $0x90] sm:$0xff]
        %v234 = vld [vmem:[%s173 + $0x98] sm:$0xff]
        %v235 = vld [vmem:[%s173 + $0xa0] sm:$0xff]
        %v236 = vld [vmem:[%s173 + $0xa8] sm:$0xff]
        %v237 = vld [vmem:[%s173 + $0xb0] sm:$0xff]
        %v238 = vld [vmem:[%s173 + $0xb8] sm:$0xff]
        %v239 = vld [vmem:[%s173 + $0xc0] sm:$0xff]
        %v240 = vld [vmem:[%s173 + $0xc8] sm:$0xff]
        %v241 = vld [vmem:[%s173 + $0xd0] sm:$0xff]
        %v242 = vld [vmem:[%s173 + $0xd8] sm:$0xff]
        %v243 = vld [vmem:[%s173 + $0xe0] sm:$0xff]
        %v244 = vld [vmem:[%s173 + $0xe8] sm:$0xff]
        %v245 = vld [vmem:[%s173 + $0xf0] sm:$0xff]
        %v246 = vld [vmem:[%s173 + $0xf8] sm:$0xff]
        %v247 = vld [vmem:[%s173 + $0x100] sm:$0xff]
        %v248 = vld [vmem:[%s173 + $0x108] sm:$0xff]
        %v249 = vld [vmem:[%s173 + $0x110] sm:$0xff]
        %v250 = vld [vmem:[%s173 + $0x118] sm:$0xff]
        %v251 = vld [vmem:[%s173 + $0x120] sm:$0xff]
        %v252 = vld [vmem:[%s173 + $0x128] sm:$0xff]
        %v253 = vld [vmem:[%s173 + $0x130] sm:$0xff]
        %v254 = vld [vmem:[%s173 + $0x138] sm:$0xff]
        %v255 = vld [vmem:[%s173 + $0x140] sm:$0xff]
        %v256 = vld [vmem:[%s173 + $0x148] sm:$0xff]
        %v257 = vld [vmem:[%s173 + $0x150] sm:$0xff]
        %v258 = vld [vmem:[%s173 + $0x158] sm:$0xff]
        %v259 = vld [vmem:[%s173 + $0x160] sm:$0xff]
        %v260 = vld [vmem:[%s173 + $0x168] sm:$0xff]
        %v261 = vld [vmem:[%s173 + $0x170] sm:$0xff]
        %v262 = vld [vmem:[%s173 + $0x178] sm:$0xff]
        %v263 = vld [vmem:[%s173 + $0x180] sm:$0xff]
        %v264 = vld [vmem:[%s173 + $0x188] sm:$0xff]
        %v265 = vld [vmem:[%s173 + $0x190] sm:$0xff]
        %v266 = vld [vmem:[%s173 + $0x198] sm:$0xff]
        %v267 = vld [vmem:[%s173 + $0x1a0] sm:$0xff]
        %v268 = vld [vmem:[%s173 + $0x1a8] sm:$0xff]
        %v269 = vld [vmem:[%s173 + $0x1b0] sm:$0xff]
        %v270 = vld [vmem:[%s173 + $0x1b8] sm:$0xff]
        %v271 = vld [vmem:[%s173 + $0x1c0] sm:$0xff]
        %v272 = vld [vmem:[%s173 + $0x1c8] sm:$0xff]
        %v273 = vld [vmem:[%s173 + $0x1d0] sm:$0xff]
        %v274 = vld [vmem:[%s173 + $0x1d8] sm:$0xff]
        %v275 = vld [vmem:[%s173 + $0x1e0] sm:$0xff]
        %v276 = vld [vmem:[%s173 + $0x1e8] sm:$0xff]
        %v277 = vld [vmem:[%s173 + $0x1f0] sm:$0xff]
        %v278 = vld [vmem:[%s173 + $0x1f8] sm:$0xff]
        %v279 = vld [vmem:[%s182] sm:$0xff]
        %v280 = vld [vmem:[%s182 + $0x8] sm:$0xff]
        %v281 = vld [vmem:[%s182 + $0x10] sm:$0xff]
        %v282 = vld [vmem:[%s182 + $0x18] sm:$0xff]
        %v283 = vld [vmem:[%s182 + $0x20] sm:$0xff]
        %v284 = vld [vmem:[%s182 + $0x28] sm:$0xff]
        %v285 = vld [vmem:[%s182 + $0x30] sm:$0xff]
        %v286 = vld [vmem:[%s182 + $0x38] sm:$0xff]
        %v295 = vcombine.high %v279, %v279
        %v297 = vunpack.c.l.s4 1966171168
        %v298 = vunpack.c.0.s8 %v297
        %v299 = vlaneseq
        %v300 = vshrl.u32 %v299, 7
        %v301 = vsub.s32 %v298, %v300
        %v302 = vrot.slane %v279, %v301
        %v304 = vunpack.c.l.s4 1966171168
        %v305 = vunpack.c.0.s8 %v304
        %v306 = vlaneseq
        %v307 = vshrl.u32 %v306, 7
        %v308 = vsub.s32 %v305, %v307
        %v309 = vrot.slane %v295, %v308
        %v310 = vcombine.high %v302, %v302
        %v311 = vcombine.high %v309, %v309
        %v313 = vunpack.c.l.s4 1966171168
        %v314 = vunpack.c.0.s8 %v313
        %v315 = vlaneseq
        %v316 = vshrl.u32 %v315, 7
        %v317 = vsub.s32 %v314, %v316
        %v318 = vrot.slane %v302, %v317
        %v320 = vunpack.c.l.s4 1966171168
        %v321 = vunpack.c.0.s8 %v320
        %v322 = vlaneseq
        %v323 = vshrl.u32 %v322, 7
        %v324 = vsub.s32 %v321, %v323
        %v325 = vrot.slane %v309, %v324
        %v327 = vunpack.c.l.s4 1966171168
        %v328 = vunpack.c.0.s8 %v327
        %v329 = vlaneseq
        %v330 = vshrl.u32 %v329, 7
        %v331 = vsub.s32 %v328, %v330
        %v332 = vrot.slane %v310, %v331
        %v334 = vunpack.c.l.s4 1966171168
        %v335 = vunpack.c.0.s8 %v334
        %v336 = vlaneseq
        %v337 = vshrl.u32 %v336, 7
        %v338 = vsub.s32 %v335, %v337
        %v339 = vrot.slane %v311, %v338
        %v340 = vcombine.high %v318, %v318
        %v341 = vcombine.high %v325, %v325
        %v342 = vcombine.high %v332, %v332
        %v343 = vcombine.high %v339, %v339
        %v344 = vcombine.high %v280, %v280
        %v346 = vunpack.c.l.s4 1966171168
        %v347 = vunpack.c.0.s8 %v346
        %v348 = vlaneseq
        %v349 = vshrl.u32 %v348, 7
        %v350 = vsub.s32 %v347, %v349
        %v351 = vrot.slane %v280, %v350
        %v353 = vunpack.c.l.s4 1966171168
        %v354 = vunpack.c.0.s8 %v353
        %v355 = vlaneseq
        %v356 = vshrl.u32 %v355, 7
        %v357 = vsub.s32 %v354, %v356
        %v358 = vrot.slane %v344, %v357
        %v359 = vcombine.high %v351, %v351
        %v360 = vcombine.high %v358, %v358
        %v362 = vunpack.c.l.s4 1966171168
        %v363 = vunpack.c.0.s8 %v362
        %v364 = vlaneseq
        %v365 = vshrl.u32 %v364, 7
        %v366 = vsub.s32 %v363, %v365
        %v367 = vrot.slane %v351, %v366
        %v369 = vunpack.c.l.s4 1966171168
        %v370 = vunpack.c.0.s8 %v369
        %v371 = vlaneseq
        %v372 = vshrl.u32 %v371, 7
        %v373 = vsub.s32 %v370, %v372
        %v374 = vrot.slane %v358, %v373
        %v376 = vunpack.c.l.s4 1966171168
        %v377 = vunpack.c.0.s8 %v376
        %v378 = vlaneseq
        %v379 = vshrl.u32 %v378, 7
        %v380 = vsub.s32 %v377, %v379
        %v381 = vrot.slane %v359, %v380
        %v383 = vunpack.c.l.s4 1966171168
        %v384 = vunpack.c.0.s8 %v383
        %v385 = vlaneseq
        %v386 = vshrl.u32 %v385, 7
        %v387 = vsub.s32 %v384, %v386
        %v388 = vrot.slane %v360, %v387
        %v389 = vcombine.high %v367, %v367
        %v390 = vcombine.high %v374, %v374
        %v391 = vcombine.high %v381, %v381
        %v392 = vcombine.high %v388, %v388
        %v393 = vcombine.high %v281, %v281
        %v395 = vunpack.c.l.s4 1966171168
        %v396 = vunpack.c.0.s8 %v395
        %v397 = vlaneseq
        %v398 = vshrl.u32 %v397, 7
        %v399 = vsub.s32 %v396, %v398
        %v400 = vrot.slane %v281, %v399
        %v402 = vunpack.c.l.s4 1966171168
        %v403 = vunpack.c.0.s8 %v402
        %v404 = vlaneseq
        %v405 = vshrl.u32 %v404, 7
        %v406 = vsub.s32 %v403, %v405
        %v407 = vrot.slane %v393, %v406
        %v408 = vcombine.high %v400, %v400
        %v409 = vcombine.high %v407, %v407
        %v411 = vunpack.c.l.s4 1966171168
        %v412 = vunpack.c.0.s8 %v411
        %v413 = vlaneseq
        %v414 = vshrl.u32 %v413, 7
        %v415 = vsub.s32 %v412, %v414
        %v416 = vrot.slane %v400, %v415
        %v418 = vunpack.c.l.s4 1966171168
        %v419 = vunpack.c.0.s8 %v418
        %v420 = vlaneseq
        %v421 = vshrl.u32 %v420, 7
        %v422 = vsub.s32 %v419, %v421
        %v423 = vrot.slane %v407, %v422
        %v425 = vunpack.c.l.s4 1966171168
        %v426 = vunpack.c.0.s8 %v425
        %v427 = vlaneseq
        %v428 = vshrl.u32 %v427, 7
        %v429 = vsub.s32 %v426, %v428
        %v430 = vrot.slane %v408, %v429
        %v432 = vunpack.c.l.s4 1966171168
        %v433 = vunpack.c.0.s8 %v432
        %v434 = vlaneseq
        %v435 = vshrl.u32 %v434, 7
        %v436 = vsub.s32 %v433, %v435
        %v437 = vrot.slane %v409, %v436
        %v438 = vcombine.high %v416, %v416
        %v439 = vcombine.high %v423, %v423
        %v440 = vcombine.high %v430, %v430
        %v441 = vcombine.high %v437, %v437
        %v442 = vcombine.high %v282, %v282
        %v444 = vunpack.c.l.s4 1966171168
        %v445 = vunpack.c.0.s8 %v444
        %v446 = vlaneseq
        %v447 = vshrl.u32 %v446, 7
        %v448 = vsub.s32 %v445, %v447
        %v449 = vrot.slane %v282, %v448
        %v451 = vunpack.c.l.s4 1966171168
        %v452 = vunpack.c.0.s8 %v451
        %v453 = vlaneseq
        %v454 = vshrl.u32 %v453, 7
        %v455 = vsub.s32 %v452, %v454
        %v456 = vrot.slane %v442, %v455
        %v457 = vcombine.high %v449, %v449
        %v458 = vcombine.high %v456, %v456
        %v460 = vunpack.c.l.s4 1966171168
        %v461 = vunpack.c.0.s8 %v460
        %v462 = vlaneseq
        %v463 = vshrl.u32 %v462, 7
        %v464 = vsub.s32 %v461, %v463
        %v465 = vrot.slane %v449, %v464
        %v467 = vunpack.c.l.s4 1966171168
        %v468 = vunpack.c.0.s8 %v467
        %v469 = vlaneseq
        %v470 = vshrl.u32 %v469, 7
        %v471 = vsub.s32 %v468, %v470
        %v472 = vrot.slane %v456, %v471
        %v474 = vunpack.c.l.s4 1966171168
        %v475 = vunpack.c.0.s8 %v474
        %v476 = vlaneseq
        %v477 = vshrl.u32 %v476, 7
        %v478 = vsub.s32 %v475, %v477
        %v479 = vrot.slane %v457, %v478
        %v481 = vunpack.c.l.s4 1966171168
        %v482 = vunpack.c.0.s8 %v481
        %v483 = vlaneseq
        %v484 = vshrl.u32 %v483, 7
        %v485 = vsub.s32 %v482, %v484
        %v486 = vrot.slane %v458, %v485
        %v487 = vcombine.high %v465, %v465
        %v488 = vcombine.high %v472, %v472
        %v489 = vcombine.high %v479, %v479
        %v490 = vcombine.high %v486, %v486
        %v491 = vcombine.high %v283, %v283
        %v493 = vunpack.c.l.s4 1966171168
        %v494 = vunpack.c.0.s8 %v493
        %v495 = vlaneseq
        %v496 = vshrl.u32 %v495, 7
        %v497 = vsub.s32 %v494, %v496
        %v498 = vrot.slane %v283, %v497
        %v500 = vunpack.c.l.s4 1966171168
        %v501 = vunpack.c.0.s8 %v500
        %v502 = vlaneseq
        %v503 = vshrl.u32 %v502, 7
        %v504 = vsub.s32 %v501, %v503
        %v505 = vrot.slane %v491, %v504
        %v506 = vcombine.high %v498, %v498
        %v507 = vcombine.high %v505, %v505
        %v509 = vunpack.c.l.s4 1966171168
        %v510 = vunpack.c.0.s8 %v509
        %v511 = vlaneseq
        %v512 = vshrl.u32 %v511, 7
        %v513 = vsub.s32 %v510, %v512
        %v514 = vrot.slane %v498, %v513
        %v516 = vunpack.c.l.s4 1966171168
        %v517 = vunpack.c.0.s8 %v516
        %v518 = vlaneseq
        %v519 = vshrl.u32 %v518, 7
        %v520 = vsub.s32 %v517, %v519
        %v521 = vrot.slane %v505, %v520
        %v523 = vunpack.c.l.s4 1966171168
        %v524 = vunpack.c.0.s8 %v523
        %v525 = vlaneseq
        %v526 = vshrl.u32 %v525, 7
        %v527 = vsub.s32 %v524, %v526
        %v528 = vrot.slane %v506, %v527
        %v530 = vunpack.c.l.s4 1966171168
        %v531 = vunpack.c.0.s8 %v530
        %v532 = vlaneseq
        %v533 = vshrl.u32 %v532, 7
        %v534 = vsub.s32 %v531, %v533
        %v535 = vrot.slane %v507, %v534
        %v536 = vcombine.high %v514, %v514
        %v537 = vcombine.high %v521, %v521
        %v538 = vcombine.high %v528, %v528
        %v539 = vcombine.high %v535, %v535
        %v540 = vcombine.high %v284, %v284
        %v542 = vunpack.c.l.s4 1966171168
        %v543 = vunpack.c.0.s8 %v542
        %v544 = vlaneseq
        %v545 = vshrl.u32 %v544, 7
        %v546 = vsub.s32 %v543, %v545
        %v547 = vrot.slane %v284, %v546
        %v549 = vunpack.c.l.s4 1966171168
        %v550 = vunpack.c.0.s8 %v549
        %v551 = vlaneseq
        %v552 = vshrl.u32 %v551, 7
        %v553 = vsub.s32 %v550, %v552
        %v554 = vrot.slane %v540, %v553
        %v555 = vcombine.high %v547, %v547
        %v556 = vcombine.high %v554, %v554
        %v558 = vunpack.c.l.s4 1966171168
        %v559 = vunpack.c.0.s8 %v558
        %v560 = vlaneseq
        %v561 = vshrl.u32 %v560, 7
        %v562 = vsub.s32 %v559, %v561
        %v563 = vrot.slane %v547, %v562
        %v565 = vunpack.c.l.s4 1966171168
        %v566 = vunpack.c.0.s8 %v565
        %v567 = vlaneseq
        %v568 = vshrl.u32 %v567, 7
        %v569 = vsub.s32 %v566, %v568
        %v570 = vrot.slane %v554, %v569
        %v572 = vunpack.c.l.s4 1966171168
        %v573 = vunpack.c.0.s8 %v572
        %v574 = vlaneseq
        %v575 = vshrl.u32 %v574, 7
        %v576 = vsub.s32 %v573, %v575
        %v577 = vrot.slane %v555, %v576
        %v579 = vunpack.c.l.s4 1966171168
        %v580 = vunpack.c.0.s8 %v579
        %v581 = vlaneseq
        %v582 = vshrl.u32 %v581, 7
        %v583 = vsub.s32 %v580, %v582
        %v584 = vrot.slane %v556, %v583
        %v585 = vcombine.high %v563, %v563
        %v586 = vcombine.high %v570, %v570
        %v587 = vcombine.high %v577, %v577
        %v588 = vcombine.high %v584, %v584
        %v589 = vcombine.high %v285, %v285
        %v591 = vunpack.c.l.s4 1966171168
        %v592 = vunpack.c.0.s8 %v591
        %v593 = vlaneseq
        %v594 = vshrl.u32 %v593, 7
        %v595 = vsub.s32 %v592, %v594
        %v596 = vrot.slane %v285, %v595
        %v598 = vunpack.c.l.s4 1966171168
        %v599 = vunpack.c.0.s8 %v598
        %v600 = vlaneseq
        %v601 = vshrl.u32 %v600, 7
        %v602 = vsub.s32 %v599, %v601
        %v603 = vrot.slane %v589, %v602
        %v604 = vcombine.high %v596, %v596
        %v605 = vcombine.high %v603, %v603
        %v607 = vunpack.c.l.s4 1966171168
        %v608 = vunpack.c.0.s8 %v607
        %v609 = vlaneseq
        %v610 = vshrl.u32 %v609, 7
        %v611 = vsub.s32 %v608, %v610
        %v612 = vrot.slane %v596, %v611
        %v614 = vunpack.c.l.s4 1966171168
        %v615 = vunpack.c.0.s8 %v614
        %v616 = vlaneseq
        %v617 = vshrl.u32 %v616, 7
        %v618 = vsub.s32 %v615, %v617
        %v619 = vrot.slane %v603, %v618
        %v621 = vunpack.c.l.s4 1966171168
        %v622 = vunpack.c.0.s8 %v621
        %v623 = vlaneseq
        %v624 = vshrl.u32 %v623, 7
        %v625 = vsub.s32 %v622, %v624
        %v626 = vrot.slane %v604, %v625
        %v628 = vunpack.c.l.s4 1966171168
        %v629 = vunpack.c.0.s8 %v628
        %v630 = vlaneseq
        %v631 = vshrl.u32 %v630, 7
        %v632 = vsub.s32 %v629, %v631
        %v633 = vrot.slane %v605, %v632
        %v634 = vcombine.high %v612, %v612
        %v635 = vcombine.high %v619, %v619
        %v636 = vcombine.high %v626, %v626
        %v637 = vcombine.high %v633, %v633
        %v638 = vcombine.high %v286, %v286
        %v640 = vunpack.c.l.s4 1966171168
        %v641 = vunpack.c.0.s8 %v640
        %v642 = vlaneseq
        %v643 = vshrl.u32 %v642, 7
        %v644 = vsub.s32 %v641, %v643
        %v645 = vrot.slane %v286, %v644
        %v647 = vunpack.c.l.s4 1966171168
        %v648 = vunpack.c.0.s8 %v647
        %v649 = vlaneseq
        %v650 = vshrl.u32 %v649, 7
        %v651 = vsub.s32 %v648, %v650
        %v652 = vrot.slane %v638, %v651
        %v653 = vcombine.high %v645, %v645
        %v654 = vcombine.high %v652, %v652
        %v656 = vunpack.c.l.s4 1966171168
        %v657 = vunpack.c.0.s8 %v656
        %v658 = vlaneseq
        %v659 = vshrl.u32 %v658, 7
        %v660 = vsub.s32 %v657, %v659
        %v661 = vrot.slane %v645, %v660
        %v663 = vunpack.c.l.s4 1966171168
        %v664 = vunpack.c.0.s8 %v663
        %v665 = vlaneseq
        %v666 = vshrl.u32 %v665, 7
        %v667 = vsub.s32 %v664, %v666
        %v668 = vrot.slane %v652, %v667
        %v670 = vunpack.c.l.s4 1966171168
        %v671 = vunpack.c.0.s8 %v670
        %v672 = vlaneseq
        %v673 = vshrl.u32 %v672, 7
        %v674 = vsub.s32 %v671, %v673
        %v675 = vrot.slane %v653, %v674
        %v677 = vunpack.c.l.s4 1966171168
        %v678 = vunpack.c.0.s8 %v677
        %v679 = vlaneseq
        %v680 = vshrl.u32 %v679, 7
        %v681 = vsub.s32 %v678, %v680
        %v682 = vrot.slane %v654, %v681
        %v683 = vcombine.high %v661, %v661
        %v684 = vcombine.high %v668, %v668
        %v685 = vcombine.high %v675, %v675
        %v686 = vcombine.high %v682, %v682
        %v687 = vmul.f32 %v215, 11.313708
        %v688 = vmul.f32 %v216, 11.313708
        %v689 = vmul.f32 %v217, 11.313708
        %v690 = vmul.f32 %v218, 11.313708
        %v691 = vmul.f32 %v219, 11.313708
        %v692 = vmul.f32 %v220, 11.313708
        %v693 = vmul.f32 %v221, 11.313708
        %v694 = vmul.f32 %v222, 11.313708
        %v695 = vmul.f32 %v223, 11.313708
        %v696 = vmul.f32 %v224, 11.313708
        %v697 = vmul.f32 %v225, 11.313708
        %v698 = vmul.f32 %v226, 11.313708
        %v699 = vmul.f32 %v227, 11.313708
        %v700 = vmul.f32 %v228, 11.313708
        %v701 = vmul.f32 %v229, 11.313708
        %v702 = vmul.f32 %v230, 11.313708
        %v703 = vmul.f32 %v231, 11.313708
        %v704 = vmul.f32 %v232, 11.313708
        %v705 = vmul.f32 %v233, 11.313708
        %v706 = vmul.f32 %v234, 11.313708
        %v707 = vmul.f32 %v235, 11.313708
        %v708 = vmul.f32 %v236, 11.313708
        %v709 = vmul.f32 %v237, 11.313708
        %v710 = vmul.f32 %v238, 11.313708
        %v711 = vmul.f32 %v239, 11.313708
        %v712 = vmul.f32 %v240, 11.313708
        %v713 = vmul.f32 %v241, 11.313708
        %v714 = vmul.f32 %v242, 11.313708
        %v715 = vmul.f32 %v243, 11.313708
        %v716 = vmul.f32 %v244, 11.313708
        %v717 = vmul.f32 %v245, 11.313708
        %v718 = vmul.f32 %v246, 11.313708
        %v719 = vmul.f32 %v247, 11.313708
        %v720 = vmul.f32 %v248, 11.313708
        %v721 = vmul.f32 %v249, 11.313708
        %v722 = vmul.f32 %v250, 11.313708
        %v723 = vmul.f32 %v251, 11.313708
        %v724 = vmul.f32 %v252, 11.313708
        %v725 = vmul.f32 %v253, 11.313708
        %v726 = vmul.f32 %v254, 11.313708
        %v727 = vmul.f32 %v255, 11.313708
        %v728 = vmul.f32 %v256, 11.313708
        %v729 = vmul.f32 %v257, 11.313708
        %v730 = vmul.f32 %v258, 11.313708
        %v731 = vmul.f32 %v259, 11.313708
        %v732 = vmul.f32 %v260, 11.313708
        %v733 = vmul.f32 %v261, 11.313708
        %v734 = vmul.f32 %v262, 11.313708
        %v735 = vmul.f32 %v263, 11.313708
        %v736 = vmul.f32 %v264, 11.313708
        %v737 = vmul.f32 %v265, 11.313708
        %v738 = vmul.f32 %v266, 11.313708
        %v739 = vmul.f32 %v267, 11.313708
        %v740 = vmul.f32 %v268, 11.313708
        %v741 = vmul.f32 %v269, 11.313708
        %v742 = vmul.f32 %v270, 11.313708
        %v743 = vmul.f32 %v271, 11.313708
        %v744 = vmul.f32 %v272, 11.313708
        %v745 = vmul.f32 %v273, 11.313708
        %v746 = vmul.f32 %v274, 11.313708
        %v747 = vmul.f32 %v275, 11.313708
        %v748 = vmul.f32 %v276, 11.313708
        %v749 = vmul.f32 %v277, 11.313708
        %v750 = vmul.f32 %v278, 11.313708
        %v751 = vlaneseq
        %v752 = vshrl.u32 %v751, 7
        %v753 = vsub.s32 0, %v752
        %v754 = vrot.slane %v318, %v753
        %v755 = vlaneseq
        %v756 = vshrl.u32 %v755, 7
        %v757 = vsub.s32 0, %v756
        %v758 = vrot.slane %v332, %v757
        %v759 = vlaneseq
        %v760 = vshrl.u32 %v759, 7
        %v761 = vsub.s32 0, %v760
        %v762 = vrot.slane %v340, %v761
        %v763 = vlaneseq
        %v764 = vshrl.u32 %v763, 7
        %v765 = vsub.s32 0, %v764
        %v766 = vrot.slane %v342, %v765
        %v767 = vlaneseq
        %v768 = vshrl.u32 %v767, 7
        %v769 = vsub.s32 0, %v768
        %v770 = vrot.slane %v325, %v769
        %v771 = vlaneseq
        %v772 = vshrl.u32 %v771, 7
        %v773 = vsub.s32 0, %v772
        %v774 = vrot.slane %v339, %v773
        %v775 = vlaneseq
        %v776 = vshrl.u32 %v775, 7
        %v777 = vsub.s32 0, %v776
        %v778 = vrot.slane %v341, %v777
        %v779 = vlaneseq
        %v780 = vshrl.u32 %v779, 7
        %v781 = vsub.s32 0, %v780
        %v782 = vrot.slane %v343, %v781
        %v783 = vlaneseq
        %v784 = vshrl.u32 %v783, 7
        %v785 = vsub.s32 0, %v784
        %v786 = vrot.slane %v367, %v785
        %v787 = vlaneseq
        %v788 = vshrl.u32 %v787, 7
        %v789 = vsub.s32 0, %v788
        %v790 = vrot.slane %v381, %v789
        %v791 = vlaneseq
        %v792 = vshrl.u32 %v791, 7
        %v793 = vsub.s32 0, %v792
        %v794 = vrot.slane %v389, %v793
        %v795 = vlaneseq
        %v796 = vshrl.u32 %v795, 7
        %v797 = vsub.s32 0, %v796
        %v798 = vrot.slane %v391, %v797
        %v799 = vlaneseq
        %v800 = vshrl.u32 %v799, 7
        %v801 = vsub.s32 0, %v800
        %v802 = vrot.slane %v374, %v801
        %v803 = vlaneseq
        %v804 = vshrl.u32 %v803, 7
        %v805 = vsub.s32 0, %v804
        %v806 = vrot.slane %v388, %v805
        %v807 = vlaneseq
        %v808 = vshrl.u32 %v807, 7
        %v809 = vsub.s32 0, %v808
        %v810 = vrot.slane %v390, %v809
        %v811 = vlaneseq
        %v812 = vshrl.u32 %v811, 7
        %v813 = vsub.s32 0, %v812
        %v814 = vrot.slane %v392, %v813
        %v815 = vlaneseq
        %v816 = vshrl.u32 %v815, 7
        %v817 = vsub.s32 0, %v816
        %v818 = vrot.slane %v416, %v817
        %v819 = vlaneseq
        %v820 = vshrl.u32 %v819, 7
        %v821 = vsub.s32 0, %v820
        %v822 = vrot.slane %v430, %v821
        %v823 = vlaneseq
        %v824 = vshrl.u32 %v823, 7
        %v825 = vsub.s32 0, %v824
        %v826 = vrot.slane %v438, %v825
        %v827 = vlaneseq
        %v828 = vshrl.u32 %v827, 7
        %v829 = vsub.s32 0, %v828
        %v830 = vrot.slane %v440, %v829
        %v831 = vlaneseq
        %v832 = vshrl.u32 %v831, 7
        %v833 = vsub.s32 0, %v832
        %v834 = vrot.slane %v423, %v833
        %v835 = vlaneseq
        %v836 = vshrl.u32 %v835, 7
        %v837 = vsub.s32 0, %v836
        %v838 = vrot.slane %v437, %v837
        %v839 = vlaneseq
        %v840 = vshrl.u32 %v839, 7
        %v841 = vsub.s32 0, %v840
        %v842 = vrot.slane %v439, %v841
        %v843 = vlaneseq
        %v844 = vshrl.u32 %v843, 7
        %v845 = vsub.s32 0, %v844
        %v846 = vrot.slane %v441, %v845
        %v847 = vlaneseq
        %v848 = vshrl.u32 %v847, 7
        %v849 = vsub.s32 0, %v848
        %v850 = vrot.slane %v465, %v849
        %v851 = vlaneseq
        %v852 = vshrl.u32 %v851, 7
        %v853 = vsub.s32 0, %v852
        %v854 = vrot.slane %v479, %v853
        %v855 = vlaneseq
        %v856 = vshrl.u32 %v855, 7
        %v857 = vsub.s32 0, %v856
        %v858 = vrot.slane %v487, %v857
        %v859 = vlaneseq
        %v860 = vshrl.u32 %v859, 7
        %v861 = vsub.s32 0, %v860
        %v862 = vrot.slane %v489, %v861
        %v863 = vlaneseq
        %v864 = vshrl.u32 %v863, 7
        %v865 = vsub.s32 0, %v864
        %v866 = vrot.slane %v472, %v865
        %v867 = vlaneseq
        %v868 = vshrl.u32 %v867, 7
        %v869 = vsub.s32 0, %v868
        %v870 = vrot.slane %v486, %v869
        %v871 = vlaneseq
        %v872 = vshrl.u32 %v871, 7
        %v873 = vsub.s32 0, %v872
        %v874 = vrot.slane %v488, %v873
        %v875 = vlaneseq
        %v876 = vshrl.u32 %v875, 7
        %v877 = vsub.s32 0, %v876
        %v878 = vrot.slane %v490, %v877
        %v879 = vlaneseq
        %v880 = vshrl.u32 %v879, 7
        %v881 = vsub.s32 0, %v880
        %v882 = vrot.slane %v514, %v881
        %v883 = vlaneseq
        %v884 = vshrl.u32 %v883, 7
        %v885 = vsub.s32 0, %v884
        %v886 = vrot.slane %v528, %v885
        %v887 = vlaneseq
        %v888 = vshrl.u32 %v887, 7
        %v889 = vsub.s32 0, %v888
        %v890 = vrot.slane %v536, %v889
        %v891 = vlaneseq
        %v892 = vshrl.u32 %v891, 7
        %v893 = vsub.s32 0, %v892
        %v894 = vrot.slane %v538, %v893
        %v895 = vlaneseq
        %v896 = vshrl.u32 %v895, 7
        %v897 = vsub.s32 0, %v896
        %v898 = vrot.slane %v521, %v897
        %v899 = vlaneseq
        %v900 = vshrl.u32 %v899, 7
        %v901 = vsub.s32 0, %v900
        %v902 = vrot.slane %v535, %v901
        %v903 = vlaneseq
        %v904 = vshrl.u32 %v903, 7
        %v905 = vsub.s32 0, %v904
        %v906 = vrot.slane %v537, %v905
        %v907 = vlaneseq
        %v908 = vshrl.u32 %v907, 7
        %v909 = vsub.s32 0, %v908
        %v910 = vrot.slane %v539, %v909
        %v911 = vlaneseq
        %v912 = vshrl.u32 %v911, 7
        %v913 = vsub.s32 0, %v912
        %v914 = vrot.slane %v563, %v913
        %v915 = vlaneseq
        %v916 = vshrl.u32 %v915, 7
        %v917 = vsub.s32 0, %v916
        %v918 = vrot.slane %v577, %v917
        %v919 = vlaneseq
        %v920 = vshrl.u32 %v919, 7
        %v921 = vsub.s32 0, %v920
        %v922 = vrot.slane %v585, %v921
        %v923 = vlaneseq
        %v924 = vshrl.u32 %v923, 7
        %v925 = vsub.s32 0, %v924
        %v926 = vrot.slane %v587, %v925
        %v927 = vlaneseq
        %v928 = vshrl.u32 %v927, 7
        %v929 = vsub.s32 0, %v928
        %v930 = vrot.slane %v570, %v929
        %v931 = vlaneseq
        %v932 = vshrl.u32 %v931, 7
        %v933 = vsub.s32 0, %v932
        %v934 = vrot.slane %v584, %v933
        %v935 = vlaneseq
        %v936 = vshrl.u32 %v935, 7
        %v937 = vsub.s32 0, %v936
        %v938 = vrot.slane %v586, %v937
        %v939 = vlaneseq
        %v940 = vshrl.u32 %v939, 7
        %v941 = vsub.s32 0, %v940
        %v942 = vrot.slane %v588, %v941
        %v943 = vlaneseq
        %v944 = vshrl.u32 %v943, 7
        %v945 = vsub.s32 0, %v944
        %v946 = vrot.slane %v612, %v945
        %v947 = vlaneseq
        %v948 = vshrl.u32 %v947, 7
        %v949 = vsub.s32 0, %v948
        %v950 = vrot.slane %v626, %v949
        %v951 = vlaneseq
        %v952 = vshrl.u32 %v951, 7
        %v953 = vsub.s32 0, %v952
        %v954 = vrot.slane %v634, %v953
        %v955 = vlaneseq
        %v956 = vshrl.u32 %v955, 7
        %v957 = vsub.s32 0, %v956
        %v958 = vrot.slane %v636, %v957
        %v959 = vlaneseq
        %v960 = vshrl.u32 %v959, 7
        %v961 = vsub.s32 0, %v960
        %v962 = vrot.slane %v619, %v961
        %v963 = vlaneseq
        %v964 = vshrl.u32 %v963, 7
        %v965 = vsub.s32 0, %v964
        %v966 = vrot.slane %v633, %v965
        %v967 = vlaneseq
        %v968 = vshrl.u32 %v967, 7
        %v969 = vsub.s32 0, %v968
        %v970 = vrot.slane %v635, %v969
        %v971 = vlaneseq
        %v972 = vshrl.u32 %v971, 7
        %v973 = vsub.s32 0, %v972
        %v974 = vrot.slane %v637, %v973
        %v975 = vlaneseq
        %v976 = vshrl.u32 %v975, 7
        %v977 = vsub.s32 0, %v976
        %v978 = vrot.slane %v661, %v977
        %v979 = vlaneseq
        %v980 = vshrl.u32 %v979, 7
        %v981 = vsub.s32 0, %v980
        %v982 = vrot.slane %v675, %v981
        %v983 = vlaneseq
        %v984 = vshrl.u32 %v983, 7
        %v985 = vsub.s32 0, %v984
        %v986 = vrot.slane %v683, %v985
        %v987 = vlaneseq
        %v988 = vshrl.u32 %v987, 7
        %v989 = vsub.s32 0, %v988
        %v990 = vrot.slane %v685, %v989
        %v991 = vlaneseq
        %v992 = vshrl.u32 %v991, 7
        %v993 = vsub.s32 0, %v992
        %v994 = vrot.slane %v668, %v993
        %v995 = vlaneseq
        %v996 = vshrl.u32 %v995, 7
        %v997 = vsub.s32 0, %v996
        %v998 = vrot.slane %v682, %v997
        %v999 = vlaneseq
        %v1000 = vshrl.u32 %v999, 7
        %v1001 = vsub.s32 0, %v1000
        %v1002 = vrot.slane %v684, %v1001
        %v1003 = vlaneseq
        %v1004 = vshrl.u32 %v1003, 7
        %v1005 = vsub.s32 0, %v1004
        %v1006 = vrot.slane %v686, %v1005
        %v1071 = vadd.f32 %v687, %v754
        %v1072 = vadd.f32 %v688, %v758
        %v1073 = vadd.f32 %v689, %v762
        %v1074 = vadd.f32 %v690, %v766
        %v1075 = vadd.f32 %v691, %v770
        %v1076 = vadd.f32 %v692, %v774
        %v1077 = vadd.f32 %v693, %v778
        %v1078 = vadd.f32 %v694, %v782
        %v1079 = vadd.f32 %v695, %v786
        %v1080 = vadd.f32 %v696, %v790
        %v1081 = vadd.f32 %v697, %v794
        %v1082 = vadd.f32 %v698, %v798
        %v1083 = vadd.f32 %v699, %v802
        %v1084 = vadd.f32 %v700, %v806
        %v1085 = vadd.f32 %v701, %v810
        %v1086 = vadd.f32 %v702, %v814
        %v1087 = vadd.f32 %v703, %v818
        %v1088 = vadd.f32 %v704, %v822
        %v1089 = vadd.f32 %v705, %v826
        %v1090 = vadd.f32 %v706, %v830
        %v1091 = vadd.f32 %v707, %v834
        %v1092 = vadd.f32 %v708, %v838
        %v1093 = vadd.f32 %v709, %v842
        %v1094 = vadd.f32 %v710, %v846
        %v1095 = vadd.f32 %v711, %v850
        %v1096 = vadd.f32 %v712, %v854
        %v1097 = vadd.f32 %v713, %v858
        %v1098 = vadd.f32 %v714, %v862
        %v1099 = vadd.f32 %v715, %v866
        %v1100 = vadd.f32 %v716, %v870
        %v1101 = vadd.f32 %v717, %v874
        %v1102 = vadd.f32 %v718, %v878
        %v1103 = vadd.f32 %v719, %v882
        %v1104 = vadd.f32 %v720, %v886
        %v1105 = vadd.f32 %v721, %v890
        %v1106 = vadd.f32 %v722, %v894
        %v1107 = vadd.f32 %v723, %v898
        %v1108 = vadd.f32 %v724, %v902
        %v1109 = vadd.f32 %v725, %v906
        %v1110 = vadd.f32 %v726, %v910
        %v1111 = vadd.f32 %v727, %v914
        %v1112 = vadd.f32 %v728, %v918
        %v1113 = vadd.f32 %v729, %v922
        %v1114 = vadd.f32 %v730, %v926
        %v1115 = vadd.f32 %v731, %v930
        %v1116 = vadd.f32 %v732, %v934
        %v1117 = vadd.f32 %v733, %v938
        %v1118 = vadd.f32 %v734, %v942
        %v1119 = vadd.f32 %v735, %v946
        %v1120 = vadd.f32 %v736, %v950
        %v1121 = vadd.f32 %v737, %v954
        %v1122 = vadd.f32 %v738, %v958
        %v1123 = vadd.f32 %v739, %v962
        %v1124 = vadd.f32 %v740, %v966
        %v1125 = vadd.f32 %v741, %v970
        %v1126 = vadd.f32 %v742, %v974
        %v1127 = vadd.f32 %v743, %v978
        %v1128 = vadd.f32 %v744, %v982
        %v1129 = vadd.f32 %v745, %v986
        %v1130 = vadd.f32 %v746, %v990
        %v1131 = vadd.f32 %v747, %v994
        %v1132 = vadd.f32 %v748, %v998
        %v1133 = vadd.f32 %v749, %v1002
        %v1134 = vadd.f32 %v750, %v1006
        %1135 = vst [vmem:[%s207] sm:$0xff] %v1071
        %1136 = vst [vmem:[%s207 + $0x8] sm:$0xff] %v1072
        %1137 = vst [vmem:[%s207 + $0x10] sm:$0xff] %v1073
        %1138 = vst [vmem:[%s207 + $0x18] sm:$0xff] %v1074
        %1139 = vst [vmem:[%s207 + $0x20] sm:$0xff] %v1075
        %1140 = vst [vmem:[%s207 + $0x28] sm:$0xff] %v1076
        %1141 = vst [vmem:[%s207 + $0x30] sm:$0xff] %v1077
        %1142 = vst [vmem:[%s207 + $0x38] sm:$0xff] %v1078
        %1143 = vst [vmem:[%s207 + $0x40] sm:$0xff] %v1079
        %1144 = vst [vmem:[%s207 + $0x48] sm:$0xff] %v1080
        %1145 = vst [vmem:[%s207 + $0x50] sm:$0xff] %v1081
        %1146 = vst [vmem:[%s207 + $0x58] sm:$0xff] %v1082
        %1147 = vst [vmem:[%s207 + $0x60] sm:$0xff] %v1083
        %1148 = vst [vmem:[%s207 + $0x68] sm:$0xff] %v1084
        %1149 = vst [vmem:[%s207 + $0x70] sm:$0xff] %v1085
        %1150 = vst [vmem:[%s207 + $0x78] sm:$0xff] %v1086
        %1151 = vst [vmem:[%s207 + $0x80] sm:$0xff] %v1087
        %1152 = vst [vmem:[%s207 + $0x88] sm:$0xff] %v1088
        %1153 = vst [vmem:[%s207 + $0x90] sm:$0xff] %v1089
        %1154 = vst [vmem:[%s207 + $0x98] sm:$0xff] %v1090
        %1155 = vst [vmem:[%s207 + $0xa0] sm:$0xff] %v1091
        %1156 = vst [vmem:[%s207 + $0xa8] sm:$0xff] %v1092
        %1157 = vst [vmem:[%s207 + $0xb0] sm:$0xff] %v1093
        %1158 = vst [vmem:[%s207 + $0xb8] sm:$0xff] %v1094
        %1159 = vst [vmem:[%s207 + $0xc0] sm:$0xff] %v1095
        %1160 = vst [vmem:[%s207 + $0xc8] sm:$0xff] %v1096
        %1161 = vst [vmem:[%s207 + $0xd0] sm:$0xff] %v1097
        %1162 = vst [vmem:[%s207 + $0xd8] sm:$0xff] %v1098
        %1163 = vst [vmem:[%s207 + $0xe0] sm:$0xff] %v1099
        %1164 = vst [vmem:[%s207 + $0xe8] sm:$0xff] %v1100
        %1165 = vst [vmem:[%s207 + $0xf0] sm:$0xff] %v1101
        %1166 = vst [vmem:[%s207 + $0xf8] sm:$0xff] %v1102
        %1167 = vst [vmem:[%s207 + $0x100] sm:$0xff] %v1103
        %1168 = vst [vmem:[%s207 + $0x108] sm:$0xff] %v1104
        %1169 = vst [vmem:[%s207 + $0x110] sm:$0xff] %v1105
        %1170 = vst [vmem:[%s207 + $0x118] sm:$0xff] %v1106
        %1171 = vst [vmem:[%s207 + $0x120] sm:$0xff] %v1107
        %1172 = vst [vmem:[%s207 + $0x128] sm:$0xff] %v1108
        %1173 = vst [vmem:[%s207 + $0x130] sm:$0xff] %v1109
        %1174 = vst [vmem:[%s207 + $0x138] sm:$0xff] %v1110
        %1175 = vst [vmem:[%s207 + $0x140] sm:$0xff] %v1111
        %1176 = vst [vmem:[%s207 + $0x148] sm:$0xff] %v1112
        %1177 = vst [vmem:[%s207 + $0x150] sm:$0xff] %v1113
        %1178 = vst [vmem:[%s207 + $0x158] sm:$0xff] %v1114
        %1179 = vst [vmem:[%s207 + $0x160] sm:$0xff] %v1115
        %1180 = vst [vmem:[%s207 + $0x168] sm:$0xff] %v1116
        %1181 = vst [vmem:[%s207 + $0x170] sm:$0xff] %v1117
        %1182 = vst [vmem:[%s207 + $0x178] sm:$0xff] %v1118
        %1183 = vst [vmem:[%s207 + $0x180] sm:$0xff] %v1119
        %1184 = vst [vmem:[%s207 + $0x188] sm:$0xff] %v1120
        %1185 = vst [vmem:[%s207 + $0x190] sm:$0xff] %v1121
        %1186 = vst [vmem:[%s207 + $0x198] sm:$0xff] %v1122
        %1187 = vst [vmem:[%s207 + $0x1a0] sm:$0xff] %v1123
        %1188 = vst [vmem:[%s207 + $0x1a8] sm:$0xff] %v1124
        %1189 = vst [vmem:[%s207 + $0x1b0] sm:$0xff] %v1125
        %1190 = vst [vmem:[%s207 + $0x1b8] sm:$0xff] %v1126
        %1191 = vst [vmem:[%s207 + $0x1c0] sm:$0xff] %v1127
        %1192 = vst [vmem:[%s207 + $0x1c8] sm:$0xff] %v1128
        %1193 = vst [vmem:[%s207 + $0x1d0] sm:$0xff] %v1129
        %1194 = vst [vmem:[%s207 + $0x1d8] sm:$0xff] %v1130
        %1195 = vst [vmem:[%s207 + $0x1e0] sm:$0xff] %v1131
        %1196 = vst [vmem:[%s207 + $0x1e8] sm:$0xff] %v1132
        %1197 = vst [vmem:[%s207 + $0x1f0] sm:$0xff] %v1133
        %1198 = vst [vmem:[%s207 + $0x1f8] sm:$0xff] %v1134
        %s1199 = sand.u32 %s82, 1
        %s1200 = scalar_lea.sflag [#allocation4], %s1199
        %s1201 = sand.u32 %s82, 1
        %s1202 = smul.addr %s1201, 512
        %s1203 = scalar_lea.vmem [#allocation7], %s1202
        // Predicated region
        $region37: #{tpu_custom_call.1} parent=27 // pred_check
          %p1204 = pneg %p92
        $region38: #{tpu_custom_call.1} parent=27 // pred_check_branch
          %1206 = sbr.rel (%p1204) target = $region40
        $region39: #{tpu_custom_call.1} parent=27 // pred_region
          %s1207 = smul.u32 64, %s22
          %s1209 = ssub.s32 8192, 8192
          %1210 = vsyncadd %s1200, %s1209
          %s1211 = smul.addr %s1207, 128
          %s1212 = scalar_lea.hbm %s2, %s1211
          %s1213 = sshll.u32 %s1203, 4
          %s1214 = int_to_ptr.vmem [resolvable:$true] %s1213
          %1219 = dma.vmem_to_hbm [thread:$0]  %s1214, 8192, %s1212, %s1200, 128, 128, 8
        $region40: #{tpu_custom_call.1} parent=27 // pred_fallthru
          _
      $region28: #{tpu_custom_call.1} parent=5 // pred_fallthru
        _
      %p1220 = scmp.le.s32.totalorder 2, %s17
      // Predicated region
      $region41: #{tpu_custom_call.1} parent=5 // pred_check
        %p1221 = pneg %p1220
      $region42: #{tpu_custom_call.1} parent=5 // pred_check_branch
        %1223 = sbr.rel (%p1221) target = $region44
      $region43: #{tpu_custom_call.1} parent=5 // pred_region
        %s1224 = ssub.s32 %s17, 2
        // Predicated region
        $region45: #{tpu_custom_call.1} parent=43 // pred_check
          %p1225 = pneg %p98
        $region46: #{tpu_custom_call.1} parent=43 // pred_check_branch
          %1227 = sbr.rel (%p1225) target = $region48
        $region47: #{tpu_custom_call.1} parent=43 // pred_region
          %s1228 = sand.u32 %s83, 1
          %s1229 = scalar_lea.sflag [#allocation4], %s1228
          %s1230 = sand.u32 %s83, 1
          %s1231 = smul.addr %s1230, 512
          %s1232 = scalar_lea.vmem [#allocation7], %s1231
          %1233 = dma.done %s1229, 8192
        $region48: #{tpu_custom_call.1} parent=43 // pred_fallthru
          _
      $region44: #{tpu_custom_call.1} parent=5 // pred_fallthru
        _
    $region6: #{tpu_custom_call.1} parent=1 // loop_footer
      %s21 = sadd.s32 1, %s17
    $region7: #{tpu_custom_call.1} parent=1 // loop_footer_branch
      %16 = sbr.rel target = $region3
    $region8: #{tpu_custom_call.1} parent=1 // loop_exit
      _
    %1234 = vsyncpa [#allocation3], 1
    %s1235 = scalar_lea.sflag [#allocation3], 1
    %1236 = vsyncpa %s1235, 1
    %1237 = vsyncpa [#allocation6], 1
    %s1238 = scalar_lea.sflag [#allocation6], 1
    %1239 = vsyncpa %s1238, 1
    %1240 = vsyncpa [#allocation4], 1
    %s1241 = scalar_lea.sflag [#allocation4], 1
    %1242 = vsyncpa %s1241, 1

</llo_original>
